<compile_context>
chip_gen: v7x
topology: tpu7x:2x2x1
jax: 0.10.0
libtpu: 0.0.40
codegen_flags: <defaults>
</compile_context>

<pallas_src>
import functools

import jax
import jax.numpy as jnp
from jax import lax
from jax.experimental import pallas as pl
from jax.experimental.pallas import tpu as pltpu


def _round_up(x, m):
    return ((x + m - 1) // m) * m


# ----------------------------- kernels --------------------------------------


def _gather_single_tile_kernel(probs_ref, feats_ref, out_ref, *, scale):
    """Whole spatial extent in one tile: plain softmax + one MXU matmul.

    probs_ref: (1, K, N)   feats_ref: (1, Ct, N)   out_ref: (1, Ct, K)
    """
    p = probs_ref[0].astype(jnp.float32)                       # (K, N) f32
    s = p if scale == 1.0 else scale * p
    m = jnp.max(s, axis=-1, keepdims=True)
    e = jnp.exp(s - m)
    w = e / jnp.sum(e, axis=-1, keepdims=True)                 # (K, N) f32
    f = feats_ref[0]                                           # (Ct, N) native dtype
    ctx = lax.dot_general(
        f, w.astype(f.dtype),
        dimension_numbers=(((1,), (1,)), ((), ())),
        preferred_element_type=jnp.float32)                    # (Ct, K)
    out_ref[0] = ctx.astype(out_ref.dtype)


def _gather_streaming_kernel(probs_ref, feats_ref, out_ref,
                             m_ref, l_ref, acc_ref,
                             *, scale, n_valid, tile_n, ragged, sentinel_pad):
    """Streaming online-softmax over the spatial axis.

    probs_ref: (1, K, TN)   feats_ref: (1, Ct, TN)   out_ref: (1, Ct, K)
    m_ref/l_ref: (K, 1) f32 running max/sum; acc_ref: (Ct, K) f32 accumulator.
    """
    n = pl.program_id(2)
    n_last = pl.num_programs(2) - 1

    @pl.when(n == 0)
    def _init():
        m_ref[...] = jnp.full_like(m_ref, -jnp.inf)
        l_ref[...] = jnp.zeros_like(l_ref)
        acc_ref[...] = jnp.zeros_like(acc_ref)

    p = probs_ref[0].astype(jnp.float32)       # (K, TN) -- softmax math in f32
    f = feats_ref[0]                           # (Ct, TN) -- native dtype, no upcast
    s = p if scale == 1.0 else scale * p

    if ragged:
        # feats is NOT padded host-side; its last (partial) block has an
        # unspecified tail in VMEM.  Zero it so 0 * garbage can never poison
        # the accumulator.  `valid` is all-True except on the last tile, so the
        # select is a no-op elsewhere (and hidden under DMA regardless).
        col = lax.broadcasted_iota(jnp.int32, (1, tile_n), 1) + n * tile_n
        valid = col < n_valid                                   # (1, TN)
        f = jnp.where(valid, f, jnp.zeros((), f.dtype))
        if not sentinel_pad:
            # scale == 0 edge case: sentinel padding of probs is ineffective,
            # mask the logits directly instead.
            s = jnp.where(valid, s, -jnp.inf)

    # Online (streaming) softmax statistics over the spatial axis.
    m_prev = m_ref[...]                                         # (K, 1)
    m_new = jnp.maximum(m_prev, jnp.max(s, axis=-1, keepdims=True))
    corr = jnp.exp(m_prev - m_new)                              # (K, 1)
    e = jnp.exp(s - m_new)                                      # (K, TN) f32
    l_ref[...] = corr * l_ref[...] + jnp.sum(e, axis=-1, keepdims=True)
    m_ref[...] = m_new

    # (Ct, TN) x (K, TN)^T -> (Ct, K): contraction over the spatial tile on the
    # MXU with f32 accumulation; weights cast to feats dtype (bf16 in prod).
    partial = lax.dot_general(
        f, e.astype(f.dtype),
        dimension_numbers=(((1,), (1,)), ((), ())),
        preferred_element_type=jnp.float32)
    acc_ref[...] = acc_ref[...] * jnp.reshape(corr, (1, -1)) + partial

    @pl.when(n == n_last)
    def _finalize():
        # Runs once per (b, c): exact normalization (no approx reciprocal).
        out_ref[0] = (acc_ref[...] / jnp.reshape(l_ref[...], (1, -1))
                      ).astype(out_ref.dtype)


# ----------------------------- host wrapper ---------------------------------


def _tpu_vmem_capacity():
    try:
        info = pltpu.get_tpu_info()
        cap = getattr(info, "vmem_capacity_bytes", None)
        if cap:
            return int(cap)
    except Exception:
        pass
    return 64 << 20   # conservative default (v7x-sized)


def _auto_c_tiles(batch, channels):
    """Split channels only on 2-TensorCore parts (v7x) when the batch axis
    alone cannot keep both cores busy; on 1-TC chips it would just duplicate
    the probs traffic / softmax work."""
    try:
        kind = jax.devices()[0].device_kind.lower()
    except Exception:
        kind = ""
    if "v7" in kind and batch % 2 == 1 and channels % 16 == 0 and channels >= 32:
        return 2
    return 1


def _choose_tile_n(n, k, c_tile, p_isz, f_isz, target_bytes, max_in_bytes):
    """Spatial tile: as large as the VMEM budget allows (the kernel is
    HBM-bound), preferring multiples of 128 that divide N exactly so no
    padding / masking is needed at all."""
    bytes_per_col = k * p_isz + c_tile * f_isz
    cap_cols = max(128, max_in_bytes // (2 * bytes_per_col))   # double-buffered
    target_cols = max(128, target_bytes // max(1, c_tile * f_isz))
    tn = min(n, cap_cols, target_cols)
    if tn >= n:
        return n                                   # single-tile fast path
    tn = max(128, (tn // 128) * 128)
    # Prefer an exact divisor of N within [tn/2, tn] -> no ragged tile.
    t = tn
    lo = max(128, tn // 2)
    while t >= lo:
        if n % t == 0:
            return t
        t -= 128
    return tn                                      # ragged fallback


def spatial_gather(feats, probs, scale=1.0, *, tile_n=None, c_tiles=None):
    """feats: (B, C, H, W), probs: (B, K, H, W) -> (B, C, K, 1)."""
    B, C, H, W = feats.shape
    Bp, K, Hp, Wp = probs.shape
    assert (B, H, W) == (Bp, Hp, Wp)
    N = H * W
    scale = float(scale)

    probs_flat = probs.reshape(B, K, N)
    feats_flat = feats.reshape(B, C, N)
    out_dtype = feats.dtype
    p_isz = probs_flat.dtype.itemsize
    f_isz = feats_flat.dtype.itemsize
    o_isz = jnp.dtype(out_dtype).itemsize

    if c_tiles is None:
        c_tiles = _auto_c_tiles(B, C)
    c_tiles = max(1, int(c_tiles))
    if C % c_tiles != 0 or (c_tiles > 1 and (C // c_tiles) % 8 != 0):
        c_tiles = 1
    tile_c = C // c_tiles

    # Generation-aware VMEM budget; ~8 MiB feats tiles keep the per-grid-step
    # overhead <10% of DMA time on v7x (3.2 TB/s) while fitting 64 MiB VMEM.
    vmem_cap = _tpu_vmem_capacity()
    vmem_budget = max(min((vmem_cap * 3) // 4, 96 << 20), 32 << 20)
    target_bytes = 8 << 20
    max_in_bytes = max(4 << 20, vmem_budget - (8 << 20))

    if tile_n is None:
        tile_n = _choose_tile_n(N, K, tile_c, p_isz, f_isz,
                                target_bytes, max_in_bytes)
    tile_n = int(min(tile_n, N))
    if tile_n < N:
        tile_n = max(128, (tile_n // 128) * 128)

    num_n_tiles = int(pl.cdiv(N, tile_n))
    ragged = (N % tile_n) != 0
    sentinel_pad = False
    if ragged:
        # Pad ONLY probs (K*N is a few % of the feats traffic); feats stays
        # unpadded -- no extra full HBM pass over the dominant tensor.  The
        # sentinel makes exp() underflow to exactly 0 on padded columns.
        n_pad = num_n_tiles * tile_n
        if scale != 0.0:
            sentinel_pad = True
            pad_val = -3.0e38 if scale > 0.0 else 3.0e38
        else:
            pad_val = 0.0                          # masked in-kernel instead
        probs_flat = jnp.pad(probs_flat, ((0, 0), (0, 0), (0, n_pad - N)),
                             constant_values=pad_val)

    # Padding-aware VMEM accounting: (8,128) tile rounding on every buffer.
    tn_pad = _round_up(tile_n, 128)
    probs_blk = _round_up(K, 8) * tn_pad * p_isz
    feats_blk = _round_up(tile_c, 8) * tn_pad * f_isz
    out_blk = _round_up(tile_c, 8) * _round_up(K, 128) * o_isz
    scratch_bytes = (_round_up(tile_c, 8) * _round_up(K, 128) * 4      # acc
                     + 2 * _round_up(K, 8) * 128 * 4)                  # m, l
    needed = 2 * (probs_blk + feats_blk) + 2 * out_blk + scratch_bytes
    vmem_limit = int(min(max(needed + (4 << 20), 16 << 20), vmem_budget))

    if num_n_tiles == 1:
        # Single-tile fast path: plain softmax, no scratch / online bookkeeping.
        kernel = functools.partial(_gather_single_tile_kernel, scale=scale)
        grid = (B, c_tiles)
        in_specs = [
            pl.BlockSpec((1, K, tile_n), lambda b, c: (b, 0, 0)),
            pl.BlockSpec((1, tile_c, tile_n), lambda b, c: (b, c, 0)),
        ]
        out_specs = pl.BlockSpec((1, tile_c, K), lambda b, c: (b, c, 0))
        scratch_shapes = []
        dim_sem = ("parallel", "parallel")
    else:
        kernel = functools.partial(
            _gather_streaming_kernel, scale=scale, n_valid=N, tile_n=tile_n,
            ragged=ragged, sentinel_pad=sentinel_pad)
        grid = (B, c_tiles, num_n_tiles)
        in_specs = [
            pl.BlockSpec((1, K, tile_n), lambda b, c, n: (b, 0, n)),
            pl.BlockSpec((1, tile_c, tile_n), lambda b, c, n: (b, c, n)),
        ]
        # Output block index ignores n -> stays resident across the reduction.
        out_specs = pl.BlockSpec((1, tile_c, K), lambda b, c, n: (b, c, 0))
        scratch_shapes = [
            pltpu.VMEM((K, 1), jnp.float32),        # running max
            pltpu.VMEM((K, 1), jnp.float32),        # running sum
            pltpu.VMEM((tile_c, K), jnp.float32),   # context accumulator
        ]
        dim_sem = ("parallel", "parallel", "arbitrary")

    ctx = pl.pallas_call(
        kernel,
        out_shape=jax.ShapeDtypeStruct((B, C, K), out_dtype),
        grid_spec=pltpu.PrefetchScalarGridSpec(
            num_scalar_prefetch=0,
            grid=grid,
            in_specs=in_specs,
            out_specs=out_specs,
            scratch_shapes=scratch_shapes,
        ),
        compiler_params=pltpu.CompilerParams(
            dimension_semantics=dim_sem,
            vmem_limit_bytes=vmem_limit,
        ),
    )(probs_flat, feats_flat)

    # (B, C, K) -> (B, C, K, 1): only the unsqueeze remains host-side.
    return ctx[..., None]


# ----------------------------- reference & tests ----------------------------


def _reference(feats, probs, scale):
    B, C, H, W = feats.shape
    K = probs.shape[1]
    p = probs.reshape(B, K, -1).astype(jnp.float32)
    f = feats.reshape(B, C, -1).astype(jnp.float32).transpose(0, 2, 1)
    p = jax.nn.softmax(scale * p, axis=2)
    ctx = jnp.einsum("bkn,bnc->bkc", p, f)
    return jnp.transpose(ctx, (0, 2, 1))[..., None].astype(feats.dtype)


if __name__ == "__main__":
    key = jax.random.PRNGKey(0)
    k1, k2, k3, k4 = jax.random.split(key, 4)

    B, C, K, H, W = 2, 16, 8, 16, 16
    feats = jax.random.normal(k1, (B, C, H, W), dtype=jnp.float32)
    probs = jax.random.normal(k2, (B, K, H, W), dtype=jnp.float32)
    ref = _reference(feats, probs, 1.0)

    # Case 1: auto tiling -> single-tile fast path (N = 256 fits one tile).
    out = jax.block_until_ready(spatial_gather(feats, probs, 1.0))
    assert out.shape == (B, C, K, 1), out.shape
    assert jnp.allclose(out, ref, atol=2e-3, rtol=2e-3), "mismatch (case 1)"

    # Case 2: force the streaming path with exact tiles (N = 256, tile_n = 128).
    out2 = jax.block_until_ready(spatial_gather(feats, probs, 1.0, tile_n=128))
    assert jnp.allclose(out2, ref, atol=2e-3, rtol=2e-3), "mismatch (case 2)"

    # Case 3: ragged streaming (N = 144, tile_n = 128) + scale != 1 ->
    # sentinel-padded probs, unpadded feats with in-kernel tail masking.
    H3 = W3 = 12
    feats3 = jax.random.normal(k3, (B, C, H3, W3), dtype=jnp.float32)
    probs3 = jax.random.normal(k4, (B, K, H3, W3), dtype=jnp.float32)
    out3 = jax.block_until_ready(spatial_gather(feats3, probs3, 2.0, tile_n=128))
    ref3 = _reference(feats3, probs3, 2.0)
    assert out3.shape == (B, C, K, 1), out3.shape
    assert jnp.allclose(out3, ref3, atol=2e-3, rtol=2e-3), "mismatch (case 3)"

    # Case 4: explicit C-tile split (the v7x dual-TensorCore path) + streaming.
    out4 = jax.block_until_ready(
        spatial_gather(feats, probs, 1.0, tile_n=128, c_tiles=2))
    assert jnp.allclose(out4, ref, atol=2e-3, rtol=2e-3), "mismatch (case 4)"

    print("KERNEL_OK")
</pallas_src>

<mosaic_0001>
module attributes {stable_mosaic.version = 11 : i64} {
  func.func @_gather_single_tile_kernel(%arg0: i32, %arg1: i32, %arg2: memref<1x8x256xf32, #tpu.memory_space<vmem>>, %arg3: memref<1x16x256xf32, #tpu.memory_space<vmem>>, %arg4: memref<1x16x8xf32, #tpu.memory_space<vmem>>) attributes {dimension_semantics = [#tpu.dimension_semantics<parallel>, #tpu.dimension_semantics<parallel>], iteration_bounds = array<i64: 2, 1>, scalar_prefetch = 0 : i64, scratch_operands = 0 : i64, tpu.core_type = #tpu.core_type<tc>, window_params = [{transform_indices = @transform_0, window_bounds = array<i64: 1, 8, 256>}, {transform_indices = @transform_1, window_bounds = array<i64: 1, 16, 256>}, {transform_indices = @transform_2, window_bounds = array<i64: 1, 16, 8>}]} {
    %c0 = arith.constant 0 : index
    %c0_0 = arith.constant 0 : index
    %c0_1 = arith.constant 0 : index
    %0 = vector.load %arg2[%c0, %c0_0, %c0_1] : memref<1x8x256xf32, #tpu.memory_space<vmem>>, vector<1x8x256xf32>
    %1 = vector.shape_cast %0 : vector<1x8x256xf32> to vector<8x256xf32>
    %cst = arith.constant dense<0xFF800000> : vector<8xf32>
    %2 = vector.multi_reduction <maximumf>, %1, %cst [1] : vector<8x256xf32> to vector<8xf32>
    %3 = vector.shape_cast %2 : vector<8xf32> to vector<8x1xf32>
    %4 = vector.broadcast %3 : vector<8x1xf32> to vector<8x256xf32>
    %5 = arith.subf %1, %4 : vector<8x256xf32>
    %6 = math.exp %5 : vector<8x256xf32>
    %cst_2 = arith.constant dense<0.000000e+00> : vector<8xf32>
    %7 = vector.multi_reduction <add>, %6, %cst_2 [1] : vector<8x256xf32> to vector<8xf32>
    %8 = vector.shape_cast %7 : vector<8xf32> to vector<8x1xf32>
    %9 = vector.broadcast %8 : vector<8x1xf32> to vector<8x256xf32>
    %10 = arith.divf %6, %9 : vector<8x256xf32>
    %c0_3 = arith.constant 0 : index
    %c0_4 = arith.constant 0 : index
    %c0_5 = arith.constant 0 : index
    %11 = vector.load %arg3[%c0_3, %c0_4, %c0_5] : memref<1x16x256xf32, #tpu.memory_space<vmem>>, vector<1x16x256xf32>
    %12 = vector.shape_cast %11 : vector<1x16x256xf32> to vector<16x256xf32>
    %cst_6 = arith.constant dense<0.000000e+00> : vector<16x8xf32>
    %13 = tpu.matmul %12, %10, %cst_6 {dimension_numbers = #tpu.dot_dimension_numbers<[1], [1], [0], [0], [0, 0, 1, 0], [], []>} : vector<16x256xf32>, vector<8x256xf32>, vector<16x8xf32> -> vector<16x8xf32>
    %c0_7 = arith.constant 0 : index
    %c0_8 = arith.constant 0 : index
    %c0_9 = arith.constant 0 : index
    %14 = vector.load %arg4[%c0_7, %c0_8, %c0_9] : memref<1x16x8xf32, #tpu.memory_space<vmem>>, vector<1x16x8xf32>
    %15 = vector.shape_cast %14 : vector<1x16x8xf32> to vector<16x8xf32>
    %16 = vector.shape_cast %13 : vector<16x8xf32> to vector<1x16x8xf32>
    tpu.vector_store %arg4[%c0_7, %c0_8, %c0_9], %16 {strides = array<i32>} : memref<1x16x8xf32, #tpu.memory_space<vmem>>, vector<1x16x8xf32>,
    return
  }
  func.func @transform_0(%arg0: i32, %arg1: i32) -> (i32, i32, i32) {
    %c0_i32 = arith.constant 0 : i32
    %c0_i32_0 = arith.constant 0 : i32
    %c0_i32_1 = arith.constant 0 : i32
    return %arg0, %c0_i32, %c0_i32_0 : i32, i32, i32
  }
  func.func @transform_1(%arg0: i32, %arg1: i32) -> (i32, i32, i32) {
    %c0_i32 = arith.constant 0 : i32
    %c0_i32_0 = arith.constant 0 : i32
    return %arg0, %arg1, %c0_i32 : i32, i32, i32
  }
  func.func @transform_2(%arg0: i32, %arg1: i32) -> (i32, i32, i32) {
    %c0_i32 = arith.constant 0 : i32
    %c0_i32_0 = arith.constant 0 : i32
    return %arg0, %arg1, %c0_i32 : i32, i32, i32
  }
}

</mosaic_0001>

<llo_original>
// kernel: tpu_custom_call.1
$region0: #{tpu_custom_call.1}
  #allocation0 [shape = 'u32[]', space=smem, size = 0x4, offset = 0x4, fixed_abs, tag = 'smem constant byte address 0x4 - core index']
  #allocation1 [shape = 'u32[144,128]{1,0:T(1,128)}', space=vmem, size = 0x12000, scoped, tag = 'internal scratch']
  %s0 = inlined_call_operand.hbm [shape: f32[2,8,256], index: 0, kind: input, shape index: {}]
  %s1 = inlined_call_operand.hbm [shape: f32[2,16,256], index: 1, kind: input, shape index: {}]
  %s2 = inlined_call_operand.vmem [shape: f32[2,16,8], index: 2, kind: output, shape index: {}]
  %s3 = sld [smem:[#allocation0]]
  $region49: #{tpu_custom_call.1} parent=0
    _
  %s5 = ssub.s32 1, %s3
  %s6 = scalar_select 0, %s5, %s3
  $region1: #{tpu_custom_call.1} parent=0
    #allocation2 [shape = 'u8[16384]{0}', space=vmem, size = 0x4000, scoped, tag = 'input window, operand 0']
    #allocation3 [shape = 's32[2]{0}', space=sflag, size = 0x8, scoped, tag = 'scoped memory for tpu_custom_call.1']
    #allocation4 [shape = 'u8[32768]{0}', space=vmem, size = 0x8000, scoped, tag = 'input window, operand 1']
    #allocation5 [shape = 's32[2]{0}', space=sflag, size = 0x8, scoped, tag = 'scoped memory for tpu_custom_call.1']
    %7 = vsyncpa [#allocation3], 0
    %s8 = scalar_lea.sflag [#allocation3], 1
    %9 = vsyncpa %s8, 0
    %10 = vsyncpa [#allocation5], 0
    %s11 = scalar_lea.sflag [#allocation5], 1
    %12 = vsyncpa %s11, 0
    loop: start=0, step=1, limit=4
    $region2: #{tpu_custom_call.1} parent=1 // loop_pre_header
      _
    $region3: #{tpu_custom_call.1} parent=1 // loop_header
      %s14 = sphi 0, %s18
      %p15 = scmp.ge.s32.totalorder %s14, 4
      %s21 = sphi 0, %s33
      %s22 = sphi 0, %s29
      %s23 = sphi 0, %s21
      %s24 = sphi 0, %s22
      %s25 = sphi 0, %s23
      %s26 = sphi 0, %s24
      %s36 = sphi 0, %s38
      %s39 = sphi 0, %s36
      %s40 = sphi 0, %s39
      %s56 = sphi 0, %s40
      %s64 = sphi 0, %s66
      %s67 = sphi 0, %s64
      %s68 = sphi 0, %s67
      %s84 = sphi 0, %s68
      %s92 = sphi 0, %s94
      %s95 = sphi 0, %s92
      %s96 = sphi 0, %s95
      %s112 = sphi 0, %s96
    $region4: #{tpu_custom_call.1} parent=1 // loop_header_branch
      %17 = sbr.rel (%p15) target = $region8
    $region5: #{tpu_custom_call.1} parent=1 // loop_body
      %s19 = ssub.s32 %s14, 1
      %s20 = ssub.s32 %s14, 2
      %s27 = sadd.s32 1, %s22
      %p28 = scmp.ge.s32.totalorder %s27, 1
      %s29 = scalar_select %p28, 0, %s27
      %s30 = sadd.s32 1, %s21
      %s31 = scalar_select %p28, %s30, %s21
      %p32 = scmp.ge.s32.totalorder %s31, 2
      %s33 = scalar_select %p32, 0, %s31
      %s34 = ssub.s32 %s21, %s33
      %p35 = scmp.eq.s32.totalorder %s34, 0
      %s37 = sadd.s32 %s36, 1
      %s38 = scalar_select %p35, %s36, %s37
      %p41 = pneg %p35
      %p42 = scmp.eq.s32.totalorder %s14, 1
      %p43 = por %p41, %p42
      %p44 = scmp.ne.s32.totalorder %s36, %s39
      %p45 = scmp.eq.s32.totalorder %s14, 0
      %p46 = por %p44, %p45
      %p47 = scmp.ne.s32.totalorder %s36, %s39
      %p48 = scmp.eq.s32.totalorder %s19, 1
      %p49 = por %p47, %p48
      %p50 = scmp.ne.s32.totalorder %s39, %s40
      %p51 = scmp.eq.s32.totalorder %s19, 0
      %p52 = por %p50, %p51
      %p53 = scmp.ne.s32.totalorder %s39, %s40
      %p54 = scmp.eq.s32.totalorder %s20, 1
      %p55 = por %p53, %p54
      %p57 = scmp.ne.s32.totalorder %s40, %s56
      %p58 = scmp.eq.s32.totalorder %s20, 0
      %p59 = por %p57, %p58
      %s60 = ssub.s32 %s21, %s33
      %s61 = ssub.s32 %s22, %s29
      %s62 = sor.u32 %s60, %s61
      %p63 = scmp.eq.s32.totalorder %s62, 0
      %s65 = sadd.s32 %s64, 1
      %s66 = scalar_select %p63, %s64, %s65
      %p69 = pneg %p63
      %p70 = scmp.eq.s32.totalorder %s14, 1
      %p71 = por %p69, %p70
      %p72 = scmp.ne.s32.totalorder %s64, %s67
      %p73 = scmp.eq.s32.totalorder %s14, 0
      %p74 = por %p72, %p73
      %p75 = scmp.ne.s32.totalorder %s64, %s67
      %p76 = scmp.eq.s32.totalorder %s19, 1
      %p77 = por %p75, %p76
      %p78 = scmp.ne.s32.totalorder %s67, %s68
      %p79 = scmp.eq.s32.totalorder %s19, 0
      %p80 = por %p78, %p79
      %p81 = scmp.ne.s32.totalorder %s67, %s68
      %p82 = scmp.eq.s32.totalorder %s20, 1
      %p83 = por %p81, %p82
      %p85 = scmp.ne.s32.totalorder %s68, %s84
      %p86 = scmp.eq.s32.totalorder %s20, 0
      %p87 = por %p85, %p86
      %s88 = ssub.s32 %s21, %s33
      %s89 = ssub.s32 %s22, %s29
      %s90 = sor.u32 %s88, %s89
      %p91 = scmp.eq.s32.totalorder %s90, 0
      %s93 = sadd.s32 %s92, 1
      %s94 = scalar_select %p91, %s92, %s93
      %p97 = pneg %p91
      %p98 = scmp.eq.s32.totalorder %s14, 1
      %p99 = por %p97, %p98
      %p100 = scmp.ne.s32.totalorder %s92, %s95
      %p101 = scmp.eq.s32.totalorder %s14, 0
      %p102 = por %p100, %p101
      %p103 = scmp.ne.s32.totalorder %s92, %s95
      %p104 = scmp.eq.s32.totalorder %s19, 1
      %p105 = por %p103, %p104
      %p106 = scmp.ne.s32.totalorder %s95, %s96
      %p107 = scmp.eq.s32.totalorder %s19, 0
      %p108 = por %p106, %p107
      %p109 = scmp.ne.s32.totalorder %s95, %s96
      %p110 = scmp.eq.s32.totalorder %s20, 1
      %p111 = por %p109, %p110
      %p113 = scmp.ne.s32.totalorder %s96, %s112
      %p114 = scmp.eq.s32.totalorder %s20, 0
      %p115 = por %p113, %p114
      %p116 = scmp.le.s32.totalorder 1, %s14
      %p117 = scmp.lt.s32.totalorder %s14, 3
      %p118 = pnand %p116, %p117
      %p119 = pneg %p118
      // Predicated region
      $region9: #{tpu_custom_call.1} parent=5 // pred_check
        _
      $region10: #{tpu_custom_call.1} parent=5 // pred_check_branch
        %121 = sbr.rel (%p118) target = $region12
      $region11: #{tpu_custom_call.1} parent=5 // pred_region
        %s122 = ssub.s32 %s14, 1
      $region12: #{tpu_custom_call.1} parent=5 // pred_fallthru
        _
      %p123 = scmp.lt.s32.totalorder %s14, 2
      // Predicated region
      $region13: #{tpu_custom_call.1} parent=5 // pred_check
        %p124 = pneg %p123
      $region14: #{tpu_custom_call.1} parent=5 // pred_check_branch
        %126 = sbr.rel (%p124) target = $region16
      $region15: #{tpu_custom_call.1} parent=5 // pred_region
        // Predicated region
        $region17: #{tpu_custom_call.1} parent=15 // pred_check
          %p127 = pneg %p46
        $region18: #{tpu_custom_call.1} parent=15 // pred_check_branch
          %129 = sbr.rel (%p127) target = $region20
        $region19: #{tpu_custom_call.1} parent=15 // pred_region
          %s130 = sand.u32 %s36, 1
          %s131 = scalar_lea.sflag [#allocation3], %s130
          %s132 = sand.u32 %s36, 1
          %s133 = smul.addr %s132, 16
          %s134 = scalar_lea.vmem [#allocation2], %s133
          %s136 = ssub.s32 256, 256
          %137 = vsyncadd %s131, %s136
          %s138 = smul.addr %s21, 2
          %s139 = smul.addr %s138, 128
          %s140 = scalar_lea.hbm %s0, %s139
          %s142 = sshll.u32 %s134, 4
          %s143 = int_to_ptr.vmem [resolvable:$true] %s142
          %145 = dma.hbm_to_vmem [thread:$0]  %s140, 256, %s143, %s131
        $region20: #{tpu_custom_call.1} parent=15 // pred_fallthru
          _
        // Predicated region
        $region21: #{tpu_custom_call.1} parent=15 // pred_check
          %p146 = pneg %p74
        $region22: #{tpu_custom_call.1} parent=15 // pred_check_branch
          %148 = sbr.rel (%p146) target = $region24
        $region23: #{tpu_custom_call.1} parent=15 // pred_region
          %s149 = sand.u32 %s64, 1
          %s150 = scalar_lea.sflag [#allocation5], %s149
          %s151 = sand.u32 %s64, 1
          %s152 = smul.addr %s151, 32
          %s153 = scalar_lea.vmem [#allocation4], %s152
          %s154 = smul.u32 2, %s22
          %s156 = ssub.s32 512, 512
          %157 = vsyncadd %s150, %s156
          %s158 = smul.addr %s154, 2
          %s159 = smul.addr %s21, 4
          %s160 = sadd.s32 %s158, %s159
          %s161 = smul.addr %s160, 128
          %s162 = scalar_lea.hbm %s1, %s161
          %s163 = sshll.u32 %s153, 4
          %s164 = int_to_ptr.vmem [resolvable:$true] %s163
          %169 = dma.hbm_to_vmem [thread:$0]  %s162, 512, %s164, %s150, 256, 256, 16
        $region24: #{tpu_custom_call.1} parent=15 // pred_fallthru
          _
      $region16: #{tpu_custom_call.1} parent=5 // pred_fallthru
        _
      %p170 = scmp.le.s32.totalorder 1, %s14
      %p171 = scmp.lt.s32.totalorder %s14, 3
      %p172 = pnand %p170, %p171
      %p173 = pneg %p172
      // Predicated region
      $region25: #{tpu_custom_call.1} parent=5 // pred_check
        _
      $region26: #{tpu_custom_call.1} parent=5 // pred_check_branch
        %175 = sbr.rel (%p172) target = $region28
      $region27: #{tpu_custom_call.1} parent=5 // pred_region
        %s176 = ssub.s32 %s14, 1
        %s177 = sand.u32 %s39, 1
        %s178 = scalar_lea.sflag [#allocation3], %s177
        %s179 = sand.u32 %s39, 1
        %s180 = smul.addr %s179, 16
        %s181 = scalar_lea.vmem [#allocation2], %s180
        // Predicated region
        $region29: #{tpu_custom_call.1} parent=27 // pred_check
          %p182 = pneg %p52
        $region30: #{tpu_custom_call.1} parent=27 // pred_check_branch
          %184 = sbr.rel (%p182) target = $region32
        $region31: #{tpu_custom_call.1} parent=27 // pred_region
          %185 = dma.done %s178, 256
        $region32: #{tpu_custom_call.1} parent=27 // pred_fallthru
          _
        %s186 = sand.u32 %s67, 1
        %s187 = scalar_lea.sflag [#allocation5], %s186
        %s188 = sand.u32 %s67, 1
        %s189 = smul.addr %s188, 32
        %s190 = scalar_lea.vmem [#allocation4], %s189
        // Predicated region
        $region33: #{tpu_custom_call.1} parent=27 // pred_check
          %p191 = pneg %p80
        $region34: #{tpu_custom_call.1} parent=27 // pred_check_branch
          %193 = sbr.rel (%p191) target = $region36
        $region35: #{tpu_custom_call.1} parent=27 // pred_region
          %194 = dma.done %s187, 512
        $region36: #{tpu_custom_call.1} parent=27 // pred_fallthru
          _
        %s195 = sand.u32 %s39, 1
        %s196 = scalar_lea.sflag [#allocation3], %s195
        %s197 = sand.u32 %s39, 1
        %s198 = smul.addr %s197, 16
        %s199 = scalar_lea.vmem [#allocation2], %s198
        %p200 = pneg %p52
        %p201 = pneg %p49
        %s202 = sand.u32 %s67, 1
        %s203 = scalar_lea.sflag [#allocation5], %s202
        %s204 = sand.u32 %s67, 1
        %s205 = smul.addr %s204, 32
        %s206 = scalar_lea.vmem [#allocation4], %s205
        %p207 = pneg %p80
        %p208 = pneg %p77
        %p209 = pneg %p108
        %p210 = pneg %p105
        %s211 = smul.u32 2, %s24
        %p212 = scmp.lt.s32.totalorder %s23, 1
        %s213 = scalar_select %p212, %s23, 1
        %p214 = scmp.lt.s32.totalorder %s211, 1
        %s215 = scalar_select %p214, %s211, 1
        %s216 = smul.addr %s213, 2
        %s217 = sadd.s32 %s215, %s216
        %s218 = smul.addr %s217, 8
        %s219 = scalar_lea.vmem %s2, %s218
        %s220 = smul.u32 2, %s24
        %s221 = smul.u32 2, %s24
        %p222 = scmp.lt.s32.totalorder %s23, 1
        %s223 = scalar_select %p222, %s23, 1
        %p224 = scmp.lt.s32.totalorder %s221, 1
        %s225 = scalar_select %p224, %s221, 1
        %s226 = smul.addr %s223, 2
        %s227 = sadd.s32 %s225, %s226
        %s228 = smul.addr %s227, 8
        %s229 = scalar_lea.vmem %s2, %s228
        %s230 = smul.u32 2, %s24
        %v231 = vld [vmem:[%s181] sm:$0xff]
        %v232 = vld [vmem:[%s181 + $0x8] sm:$0xff]
        %v233 = vmax.f32 %v231, %v232
        %234 = vmax.xlane.f32.xlu0 %v233
        %v235 = vpop.xlane.xlu0 %234
        %v236 = vsub.f32 %v231, %v235
        %v237 = vsub.f32 %v232, %v235
        %v238 = vmul.f32 %v236, 1.442695
        %v239 = vpow.pop %v238
        %v240 = vmul.f32 %v237, 1.442695
        %v241 = vpow.pop %v240
        %v242 = vadd.f32 %v239, %v241
        %243 = vadd.xlane.f32.xlu0 %v242
        %v244 = vpop.xlane.xlu0 %243
        %v245 = vrcp.pop %v244
        %v246 = vmul.f32 %v239, %v245
        %v247 = vmul.f32 %v241, %v245
        %v248 = vld [vmem:[%s190] sm:$0xff]
        %v249 = vld [vmem:[%s190 + $0x8] sm:$0xff]
        %v250 = vld [vmem:[%s190 + $0x10] sm:$0xff]
        %v251 = vld [vmem:[%s190 + $0x18] sm:$0xff]
        %252 = vmatprep.subr.mxu0 %v247
        %253 = vmatpush1.xpose.msra.mxu0 %v246
        %254 = vmatprep.subr.mxu0 0.0
        %255 = vmatpush1.xpose.msra.mxu0 0.0
        %256 = vmatprep.subr.mxu0 0.0
        %257 = vmatpush1.xpose.msra.mxu0 0.0
        %258 = vmatprep.subr.mxu0 0.0
        %259 = vmatpush1.xpose.msra.mxu0 0.0
        %260 = vmatprep.subr.mxu0 0.0
        %261 = vmatpush1.xpose.msra.mxu0 0.0
        %262 = vmatprep.subr.mxu0 0.0
        %263 = vmatpush1.xpose.msra.mxu0 0.0
        %264 = vmatprep.subr.mxu0 0.0
        %265 = vmatpush1.xpose.msra.mxu0 0.0
        %266 = vmatprep.subr.mxu0 0.0
        %267 = vmatpush1.xpose.msra.mxu0 0.0
        %268 = vmatprep.subr.mxu0 0.0
        %269 = vmatpush1.xpose.msra.mxu0 0.0
        %270 = vmatprep.subr.mxu0 0.0
        %271 = vmatpush1.xpose.msra.mxu0 0.0
        %272 = vmatprep.subr.mxu0 0.0
        %273 = vmatpush1.xpose.msra.mxu0 0.0
        %274 = vmatprep.subr.mxu0 0.0
        %275 = vmatpush1.xpose.msra.mxu0 0.0
        %276 = vmatprep.subr.mxu0 0.0
        %277 = vmatpush1.xpose.msra.mxu0 0.0
        %278 = vmatprep.subr.mxu0 0.0
        %279 = vmatpush1.xpose.msra.mxu0 0.0
        %280 = vmatprep.subr.mxu0 0.0
        %281 = vmatpush1.xpose.msra.mxu0 0.0
        %282 = vmatprep.subr.mxu0 0.0
        %283 = vmatpush1.xpose.msra.mxu0 0.0
        %284 = vmatprep.subr.mxu0 0.0
        %285 = vmatpush1.xpose.msra.mxu0 0.0
        %286 = vmatprep.subr.mxu0 0.0
        %287 = vmatpush1.xpose.msra.mxu0 0.0
        %288 = vmatprep.subr.mxu0 0.0
        %289 = vmatpush1.xpose.msra.mxu0 0.0
        %290 = vmatprep.subr.mxu0 0.0
        %291 = vmatpush1.xpose.msra.mxu0 0.0
        %292 = vmatprep.subr.mxu0 0.0
        %293 = vmatpush1.xpose.msra.mxu0 0.0
        %294 = vmatprep.subr.mxu0 0.0
        %295 = vmatpush1.xpose.msra.mxu0 0.0
        %296 = vmatprep.subr.mxu0 0.0
        %297 = vmatpush1.xpose.msra.mxu0 0.0
        %298 = vmatprep.subr.mxu0 0.0
        %299 = vmatpush1.xpose.msra.mxu0 0.0
        %300 = vmatprep.subr.mxu0 0.0
        %301 = vmatpush1.xpose.msra.mxu0 0.0
        %302 = vmatprep.subr.mxu0 0.0
        %303 = vmatpush1.xpose.msra.mxu0 0.0
        %304 = vmatprep.subr.mxu0 0.0
        %305 = vmatpush1.xpose.msra.mxu0 0.0
        %306 = vmatprep.subr.mxu0 0.0
        %307 = vmatpush1.xpose.msra.mxu0 0.0
        %308 = vmatprep.subr.mxu0 0.0
        %309 = vmatpush1.xpose.msra.mxu0 0.0
        %310 = vmatprep.subr.mxu0 0.0
        %311 = vmatpush1.xpose.msra.mxu0 0.0
        %312 = vmatprep.subr.mxu0 0.0
        %313 = vmatpush1.xpose.msra.mxu0 0.0
        %314 = vmatprep.subr.mxu0 0.0
        %315 = vmatpush1.xpose.msra.mxu0 0.0
        %316 = vmatprep.mubr.f32.mxu0 %v249
        %317 = vmatmul.mubr.f32.gmra.mrb[0].mxu0 %v248
        %v318 = vpop.f32.mrb[0].mxu0
        %v319 = vadd.f32 0.0, %v318
        %v320 = vpop.f32.mrb[0].mxu0
        %321 = vmatprep.mubr.f32.mxu0 %v251
        %322 = vmatmul.mubr.f32.gmra.mrb[0].mxu0 %v250
        %v323 = vpop.f32.mrb[0].mxu0
        %v324 = vadd.f32 0.0, %v323
        %v325 = vpop.f32.mrb[0].mxu0
        %326 = vdwg.mxu0
        %vm327 = vcmask 64512
        %328 = vst.msk [vmem:[%s229] sm:$0xff] %vm327, %v319
        %329 = vst.msk [vmem:[%s229 + $0x8] sm:$0xff] %vm327, %v324
        %s330 = smul.u32 2, %s24
        %p331 = scmp.lt.s32.totalorder %s23, 1
        %s332 = scalar_select %p331, %s23, 1
        %p333 = scmp.lt.s32.totalorder %s330, 1
        %s334 = scalar_select %p333, %s330, 1
        %s335 = smul.addr %s332, 2
        %s336 = sadd.s32 %s334, %s335
        %s337 = smul.addr %s336, 8
        %s338 = scalar_lea.vmem %s2, %s337
        // Predicated region
        $region37: #{tpu_custom_call.1} parent=27 // pred_check
          %p339 = pneg %p105
        $region38: #{tpu_custom_call.1} parent=27 // pred_check_branch
          %341 = sbr.rel (%p339) target = $region40
        $region39: #{tpu_custom_call.1} parent=27 // pred_region
          %s342 = smul.u32 2, %s24
        $region40: #{tpu_custom_call.1} parent=27 // pred_fallthru
          _
      $region28: #{tpu_custom_call.1} parent=5 // pred_fallthru
        _
      %p343 = scmp.le.s32.totalorder 2, %s14
      // Predicated region
      $region41: #{tpu_custom_call.1} parent=5 // pred_check
        %p344 = pneg %p343
      $region42: #{tpu_custom_call.1} parent=5 // pred_check_branch
        %346 = sbr.rel (%p344) target = $region44
      $region43: #{tpu_custom_call.1} parent=5 // pred_region
        %s347 = ssub.s32 %s14, 2
        // Predicated region
        $region45: #{tpu_custom_call.1} parent=43 // pred_check
          %p348 = pneg %p111
        $region46: #{tpu_custom_call.1} parent=43 // pred_check_branch
          %350 = sbr.rel (%p348) target = $region48
        $region47: #{tpu_custom_call.1} parent=43 // pred_region
          %s351 = smul.u32 2, %s26
          %p352 = scmp.lt.s32.totalorder %s25, 1
          %s353 = scalar_select %p352, %s25, 1
          %p354 = scmp.lt.s32.totalorder %s351, 1
          %s355 = scalar_select %p354, %s351, 1
          %s356 = smul.addr %s353, 2
          %s357 = sadd.s32 %s355, %s356
          %s358 = smul.addr %s357, 8
          %s359 = scalar_lea.vmem %s2, %s358
        $region48: #{tpu_custom_call.1} parent=43 // pred_fallthru
          _
      $region44: #{tpu_custom_call.1} parent=5 // pred_fallthru
        _
    $region6: #{tpu_custom_call.1} parent=1 // loop_footer
      %s18 = sadd.s32 1, %s14
    $region7: #{tpu_custom_call.1} parent=1 // loop_footer_branch
      %13 = sbr.rel target = $region3
    $region8: #{tpu_custom_call.1} parent=1 // loop_exit
      _
    %360 = vsyncpa [#allocation3], 1
    %s361 = scalar_lea.sflag [#allocation3], 1
    %362 = vsyncpa %s361, 1
    %363 = vsyncpa [#allocation5], 1
    %s364 = scalar_lea.sflag [#allocation5], 1
    %365 = vsyncpa %s364, 1

</llo_original>
